<compile_context>
chip_gen: v5e
topology: v5e:2x2
jax: 0.10.0
libtpu: 0.0.40
codegen_flags: <defaults>
</compile_context>

<pallas_src>
import functools
import math

import jax
import jax.numpy as jnp
from jax import lax
from jax.experimental import pallas as pl
from jax.experimental.pallas import tpu as pltpu

# ---- small, TPU-friendly stand-ins for the real dims -----------------------
BATCH = 16
SEQ = 8
HIDDEN = 128      # stands in for bert-base hidden_size=768
D1 = 256          # stands in for fc1 out=512
D2 = 128          # stands in for fc2 out=256
N_CLASSES = 8
N_PAD = 128       # lane-dense padded logits width
VOCAB = 64
LN_EPS = 1e-5     # nn.LayerNorm default
TM = 16           # batch rows per grid step (one packed bf16 LHS vreg)

# tanh-approx GELU runs on the EUP (own bundle slot, effectively free next to
# VALU/MXU work); set False for exact-erf parity with PyTorch nn.GELU().
GELU_APPROXIMATE = True

_SQRT_2_OVER_PI = math.sqrt(2.0 / math.pi)
_INV_SQRT_2 = 1.0 / math.sqrt(2.0)


def _gelu_tanh(x):
    return 0.5 * x * (1.0 + jnp.tanh(_SQRT_2_OVER_PI * (x + 0.044715 * x * x * x)))


def _gelu_exact(x):
    # PyTorch nn.GELU() default: exact erf-based GELU.
    return 0.5 * x * (1.0 + lax.erf(x * _INV_SQRT_2))


def classifier_head_kernel(pooled_ref, mask_ref,
                           w1_ref, b1_ref, w2_ref, b2_ref, w3_ref, b3_ref,
                           o_ref, *, approx_gelu):
    gelu = _gelu_tanh if approx_gelu else _gelu_exact

    # Fused CLS pooling mask: (TM, H) * (TM, 1).
    x = pooled_ref[...].astype(jnp.float32) * mask_ref[...]

    # LayerNorm over the feature axis — single reduction pass; the affine
    # (gamma, beta) is folded into w1/b1 at init time, so only normalize.
    inv_h = 1.0 / x.shape[-1]
    s1 = jnp.sum(x, axis=-1, keepdims=True)
    s2 = jnp.sum(x * x, axis=-1, keepdims=True)
    mu = s1 * inv_h
    var = s2 * inv_h - mu * mu
    xn = (x - mu) * lax.rsqrt(var + LN_EPS)

    # fc1 + GELU (dropout = identity at inference).  Weights are stored bf16;
    # matmul inputs are bf16 and accumulate in f32 on the MXU.
    h1 = jnp.dot(xn.astype(w1_ref.dtype), w1_ref[...],
                 preferred_element_type=jnp.float32) + b1_ref[...]
    h1 = gelu(h1)

    # fc2 + GELU
    h2 = jnp.dot(h1.astype(w2_ref.dtype), w2_ref[...],
                 preferred_element_type=jnp.float32) + b2_ref[...]
    h2 = gelu(h2)

    # fc3 (lane-dense padded logits — full-width vst)
    o_ref[...] = jnp.dot(h2.astype(w3_ref.dtype), w3_ref[...],
                         preferred_element_type=jnp.float32) + b3_ref[...]


def classifier_head(pooled, cls_mask, params, *, tm=TM,
                    approx_gelu=GELU_APPROXIMATE):
    """pooled: (B, H) f32 CLS hidden state; cls_mask: (B, 1) f32.

    Returns padded logits of shape (B, N_PAD) f32; caller slices to n_classes.
    """
    w1, b1, w2, b2, w3p, b3p = params
    B, H = pooled.shape
    d1 = w1.shape[1]
    d2 = w2.shape[1]
    npad = w3p.shape[1]
    tm = min(tm, B)
    assert B % tm == 0, "pad the batch to a multiple of tm"
    steps = B // tm

    itemsize = lambda a: a.size * a.dtype.itemsize
    cost = pl.CostEstimate(
        flops=2 * B * (H * d1 + d1 * d2 + d2 * npad),
        transcendentals=B * (d1 + d2),
        bytes_accessed=itemsize(pooled) + itemsize(cls_mask)
                       + sum(itemsize(p) for p in params) + B * npad * 4,
    )

    # Weights/biases: same block (0, 0) at every step -> resident in VMEM for
    # the whole batch.  When the grid really has >1 step, single-buffer them
    # (they never change, so double-buffering only burns VMEM + bookkeeping).
    resident_mode = pl.Buffered(1) if steps > 1 else None

    def resident(shape):
        if resident_mode is None:
            return pl.BlockSpec(shape, lambda i: (0, 0))
        return pl.BlockSpec(shape, lambda i: (0, 0), pipeline_mode=resident_mode)

    grid_spec = pltpu.PrefetchScalarGridSpec(
        num_scalar_prefetch=0,
        grid=(steps,),
        in_specs=[
            pl.BlockSpec((tm, H), lambda i: (i, 0)),       # pooled (tiled batch)
            pl.BlockSpec((tm, 1), lambda i: (i, 0)),       # CLS mask
            resident((H, d1)),                             # w1 (LN affine folded)
            resident((1, d1)),                             # b1
            resident((d1, d2)),                            # w2
            resident((1, d2)),                             # b2
            resident((d2, npad)),                          # w3 (padded)
            resident((1, npad)),                           # b3 (padded)
        ],
        out_specs=pl.BlockSpec((tm, npad), lambda i: (i, 0)),
    )

    # Megacore split only pays off when both cores get real work.
    semantics = ("parallel",) if steps >= 2 else ("arbitrary",)

    return pl.pallas_call(
        functools.partial(classifier_head_kernel, approx_gelu=approx_gelu),
        out_shape=jax.ShapeDtypeStruct((B, npad), jnp.float32),
        grid_spec=grid_spec,
        compiler_params=pltpu.CompilerParams(dimension_semantics=semantics),
        cost_estimate=cost,
    )(pooled, cls_mask, w1, b1, w2, b2, w3p, b3p)


def xavier_uniform(key, fan_in, fan_out, dtype=jnp.float32):
    # matches nn.init.xavier_uniform_ (gain=1) for a (fan_out, fan_in) torch
    # weight; we store it transposed as (fan_in, fan_out).
    bound = math.sqrt(6.0 / (fan_in + fan_out))
    return jax.random.uniform(key, (fan_in, fan_out), dtype, -bound, bound)


def init_params(key, weight_dtype=jnp.bfloat16):
    k1, k2, k3, kb1, kb2, kb3 = jax.random.split(key, 6)
    # LayerNorm: default weight=1, bias=0 (folded into fc1 below).
    gamma = jnp.ones((HIDDEN,), jnp.float32)
    beta = jnp.zeros((HIDDEN,), jnp.float32)

    w1 = xavier_uniform(k1, HIDDEN, D1)                       # f32
    w2 = xavier_uniform(k2, D1, D2)
    w3 = xavier_uniform(k3, D2, N_CLASSES)
    # nn.Linear bias default: U(-1/sqrt(fan_in), 1/sqrt(fan_in))
    b1 = jax.random.uniform(kb1, (D1,), jnp.float32,
                            -1 / math.sqrt(HIDDEN), 1 / math.sqrt(HIDDEN))
    b2 = jax.random.uniform(kb2, (D2,), jnp.float32,
                            -1 / math.sqrt(D1), 1 / math.sqrt(D1))
    b3 = jax.random.uniform(kb3, (N_CLASSES,), jnp.float32,
                            -1 / math.sqrt(D2), 1 / math.sqrt(D2))

    # Fold the LayerNorm affine into fc1 (inference-time algebra):
    #   GELU((gamma*xn + beta) @ W1 + b1) == GELU(xn @ (diag(gamma) @ W1)
    #                                             + (beta @ W1 + b1))
    w1_folded = (gamma[:, None] * w1).astype(weight_dtype)
    b1_folded = (beta @ w1 + b1).reshape(1, D1)

    w2 = w2.astype(weight_dtype)
    b2 = b2.reshape(1, D2)

    # Zero-pad fc3 to a lane-dense 128-wide output; wrapper slices back.
    w3p = jnp.zeros((D2, N_PAD), weight_dtype).at[:, :N_CLASSES].set(
        w3.astype(weight_dtype))
    b3p = jnp.zeros((1, N_PAD), jnp.float32).at[:, :N_CLASSES].set(b3)
    return (w1_folded, b1_folded, w2, b2, w3p, b3p)


def emotion_classifier_forward(input_ids, attention_mask, emb_table, params,
                               n_classes=N_CLASSES):
    # Fused CLS pooling: only token 0 of each sequence is consumed by the
    # head, so gather just those rows (no (B, S, H) last_hidden_state); the
    # CLS-mask multiply happens inside the Pallas kernel.
    # TODO(synk): real BERT backbone replaced by synthetic embedding lookup.
    cls_ids = input_ids[:, 0]                                  # (B,)
    cls_mask = attention_mask[:, :1].astype(jnp.float32)       # (B, 1)
    pooled = emb_table[cls_ids]                                # (B, H)
    logits_padded = classifier_head(pooled, cls_mask, params)  # (B, N_PAD)
    return logits_padded[:, :n_classes]                        # (B, n_classes)


if __name__ == "__main__":
    key = jax.random.PRNGKey(0)
    k_ids, k_emb, k_par = jax.random.split(key, 3)

    input_ids = jax.random.randint(k_ids, (BATCH, SEQ), 0, VOCAB, dtype=jnp.int32)
    attention_mask = jnp.ones((BATCH, SEQ), jnp.int32)
    emb_table = jax.random.normal(k_emb, (VOCAB, HIDDEN), jnp.float32) * 0.02
    params = init_params(k_par)

    logits = emotion_classifier_forward(input_ids, attention_mask, emb_table, params)
    jax.block_until_ready(logits)

    assert logits.shape == (BATCH, N_CLASSES)
    assert logits.dtype == jnp.float32
    assert bool(jnp.all(jnp.isfinite(logits)))
    print("KERNEL_OK")
</pallas_src>

<mosaic_0001>
module attributes {stable_mosaic.version = 11 : i64} {
  func.func @classifier_head_kernel(%arg0: i32, %arg1: memref<16x128xf32, #tpu.memory_space<vmem>>, %arg2: memref<16x1xf32, #tpu.memory_space<vmem>>, %arg3: memref<128x256xbf16, #tpu.memory_space<vmem>>, %arg4: memref<1x256xf32, #tpu.memory_space<vmem>>, %arg5: memref<256x128xbf16, #tpu.memory_space<vmem>>, %arg6: memref<1x128xf32, #tpu.memory_space<vmem>>, %arg7: memref<128x128xbf16, #tpu.memory_space<vmem>>, %arg8: memref<1x128xf32, #tpu.memory_space<vmem>>, %arg9: memref<16x128xf32, #tpu.memory_space<vmem>>) attributes {dimension_semantics = [#tpu.dimension_semantics<arbitrary>], iteration_bounds = array<i64: 1>, scalar_prefetch = 0 : i64, scratch_operands = 0 : i64, tpu.core_type = #tpu.core_type<tc>, window_params = [{transform_indices = @transform_0, window_bounds = array<i64: 16, 128>}, {transform_indices = @transform_1, window_bounds = array<i64: 16, 1>}, {pipeline_mode = #tpu.pipeline_mode<synchronous>, transform_indices = @transform_2, window_bounds = array<i64: 128, 256>}, {pipeline_mode = #tpu.pipeline_mode<synchronous>, transform_indices = @transform_3, window_bounds = array<i64: 1, 256>}, {pipeline_mode = #tpu.pipeline_mode<synchronous>, transform_indices = @transform_4, window_bounds = array<i64: 256, 128>}, {pipeline_mode = #tpu.pipeline_mode<synchronous>, transform_indices = @transform_5, window_bounds = array<i64: 1, 128>}, {pipeline_mode = #tpu.pipeline_mode<synchronous>, transform_indices = @transform_6, window_bounds = array<i64: 128, 128>}, {pipeline_mode = #tpu.pipeline_mode<synchronous>, transform_indices = @transform_7, window_bounds = array<i64: 1, 128>}, {transform_indices = @transform_8, window_bounds = array<i64: 16, 128>}]} {
    %c0 = arith.constant 0 : index
    %c0_0 = arith.constant 0 : index
    %0 = vector.load %arg1[%c0, %c0_0] : memref<16x128xf32, #tpu.memory_space<vmem>>, vector<16x128xf32>
    %c0_1 = arith.constant 0 : index
    %c0_2 = arith.constant 0 : index
    %1 = vector.load %arg2[%c0_1, %c0_2] : memref<16x1xf32, #tpu.memory_space<vmem>>, vector<16x1xf32>
    %2 = vector.broadcast %1 : vector<16x1xf32> to vector<16x128xf32>
    %3 = arith.mulf %0, %2 : vector<16x128xf32>
    %cst = arith.constant dense<0.000000e+00> : vector<16xf32>
    %4 = vector.multi_reduction <add>, %3, %cst [1] : vector<16x128xf32> to vector<16xf32>
    %5 = vector.shape_cast %4 : vector<16xf32> to vector<16x1xf32>
    %6 = arith.mulf %3, %3 : vector<16x128xf32>
    %cst_3 = arith.constant dense<0.000000e+00> : vector<16xf32>
    %7 = vector.multi_reduction <add>, %6, %cst_3 [1] : vector<16x128xf32> to vector<16xf32>
    %8 = vector.shape_cast %7 : vector<16xf32> to vector<16x1xf32>
    %cst_4 = arith.constant 7.812500e-03 : f32
    %9 = vector.broadcast %cst_4 : f32 to vector<16x1xf32>
    %10 = arith.mulf %5, %9 : vector<16x1xf32>
    %cst_5 = arith.constant 7.812500e-03 : f32
    %11 = vector.broadcast %cst_5 : f32 to vector<16x1xf32>
    %12 = arith.mulf %8, %11 : vector<16x1xf32>
    %13 = arith.mulf %10, %10 : vector<16x1xf32>
    %14 = arith.subf %12, %13 : vector<16x1xf32>
    %15 = vector.broadcast %10 : vector<16x1xf32> to vector<16x128xf32>
    %16 = arith.subf %3, %15 : vector<16x128xf32>
    %cst_6 = arith.constant 9.99999974E-6 : f32
    %17 = vector.broadcast %cst_6 : f32 to vector<16x1xf32>
    %18 = arith.addf %14, %17 : vector<16x1xf32>
    %19 = math.rsqrt %18 : vector<16x1xf32>
    %20 = vector.broadcast %19 : vector<16x1xf32> to vector<16x128xf32>
    %21 = arith.mulf %16, %20 : vector<16x128xf32>
    %22 = arith.truncf %21 : vector<16x128xf32> to vector<16x128xbf16>
    %c0_7 = arith.constant 0 : index
    %c0_8 = arith.constant 0 : index
    %23 = vector.load %arg3[%c0_7, %c0_8] : memref<128x256xbf16, #tpu.memory_space<vmem>>, vector<128x256xbf16>
    %cst_9 = arith.constant dense<0.000000e+00> : vector<16x256xf32>
    %24 = tpu.matmul %22, %23, %cst_9 {dimension_numbers = #tpu.dot_dimension_numbers<[1], [0], [0], [1], [0, 0, 1, 1], [], []>} : vector<16x128xbf16>, vector<128x256xbf16>, vector<16x256xf32> -> vector<16x256xf32>
    %c0_10 = arith.constant 0 : index
    %c0_11 = arith.constant 0 : index
    %25 = vector.load %arg4[%c0_10, %c0_11] : memref<1x256xf32, #tpu.memory_space<vmem>>, vector<1x256xf32>
    %26 = vector.broadcast %25 : vector<1x256xf32> to vector<16x256xf32>
    %27 = arith.addf %24, %26 : vector<16x256xf32>
    %cst_12 = arith.constant 5.000000e-01 : f32
    %28 = vector.broadcast %cst_12 : f32 to vector<16x256xf32>
    %29 = arith.mulf %28, %27 : vector<16x256xf32>
    %cst_13 = arith.constant 4.471500e-02 : f32
    %30 = vector.broadcast %cst_13 : f32 to vector<16x256xf32>
    %31 = arith.mulf %30, %27 : vector<16x256xf32>
    %32 = arith.mulf %31, %27 : vector<16x256xf32>
    %33 = arith.mulf %32, %27 : vector<16x256xf32>
    %34 = arith.addf %27, %33 : vector<16x256xf32>
    %cst_14 = arith.constant 0.797884583 : f32
    %35 = vector.broadcast %cst_14 : f32 to vector<16x256xf32>
    %36 = arith.mulf %35, %34 : vector<16x256xf32>
    %37 = math.tanh %36 : vector<16x256xf32>
    %cst_15 = arith.constant 1.000000e+00 : f32
    %38 = vector.broadcast %cst_15 : f32 to vector<16x256xf32>
    %39 = arith.addf %38, %37 : vector<16x256xf32>
    %40 = arith.mulf %29, %39 : vector<16x256xf32>
    %41 = arith.truncf %40 : vector<16x256xf32> to vector<16x256xbf16>
    %c0_16 = arith.constant 0 : index
    %c0_17 = arith.constant 0 : index
    %42 = vector.load %arg5[%c0_16, %c0_17] : memref<256x128xbf16, #tpu.memory_space<vmem>>, vector<256x128xbf16>
    %cst_18 = arith.constant dense<0.000000e+00> : vector<16x128xf32>
    %43 = tpu.matmul %41, %42, %cst_18 {dimension_numbers = #tpu.dot_dimension_numbers<[1], [0], [0], [1], [0, 0, 1, 1], [], []>} : vector<16x256xbf16>, vector<256x128xbf16>, vector<16x128xf32> -> vector<16x128xf32>
    %c0_19 = arith.constant 0 : index
    %c0_20 = arith.constant 0 : index
    %44 = vector.load %arg6[%c0_19, %c0_20] : memref<1x128xf32, #tpu.memory_space<vmem>>, vector<1x128xf32>
    %45 = vector.broadcast %44 : vector<1x128xf32> to vector<16x128xf32>
    %46 = arith.addf %43, %45 : vector<16x128xf32>
    %cst_21 = arith.constant 5.000000e-01 : f32
    %47 = vector.broadcast %cst_21 : f32 to vector<16x128xf32>
    %48 = arith.mulf %47, %46 : vector<16x128xf32>
    %cst_22 = arith.constant 4.471500e-02 : f32
    %49 = vector.broadcast %cst_22 : f32 to vector<16x128xf32>
    %50 = arith.mulf %49, %46 : vector<16x128xf32>
    %51 = arith.mulf %50, %46 : vector<16x128xf32>
    %52 = arith.mulf %51, %46 : vector<16x128xf32>
    %53 = arith.addf %46, %52 : vector<16x128xf32>
    %cst_23 = arith.constant 0.797884583 : f32
    %54 = vector.broadcast %cst_23 : f32 to vector<16x128xf32>
    %55 = arith.mulf %54, %53 : vector<16x128xf32>
    %56 = math.tanh %55 : vector<16x128xf32>
    %cst_24 = arith.constant 1.000000e+00 : f32
    %57 = vector.broadcast %cst_24 : f32 to vector<16x128xf32>
    %58 = arith.addf %57, %56 : vector<16x128xf32>
    %59 = arith.mulf %48, %58 : vector<16x128xf32>
    %60 = arith.truncf %59 : vector<16x128xf32> to vector<16x128xbf16>
    %c0_25 = arith.constant 0 : index
    %c0_26 = arith.constant 0 : index
    %61 = vector.load %arg7[%c0_25, %c0_26] : memref<128x128xbf16, #tpu.memory_space<vmem>>, vector<128x128xbf16>
    %cst_27 = arith.constant dense<0.000000e+00> : vector<16x128xf32>
    %62 = tpu.matmul %60, %61, %cst_27 {dimension_numbers = #tpu.dot_dimension_numbers<[1], [0], [0], [1], [0, 0, 1, 1], [], []>} : vector<16x128xbf16>, vector<128x128xbf16>, vector<16x128xf32> -> vector<16x128xf32>
    %c0_28 = arith.constant 0 : index
    %c0_29 = arith.constant 0 : index
    %63 = vector.load %arg8[%c0_28, %c0_29] : memref<1x128xf32, #tpu.memory_space<vmem>>, vector<1x128xf32>
    %64 = vector.broadcast %63 : vector<1x128xf32> to vector<16x128xf32>
    %65 = arith.addf %62, %64 : vector<16x128xf32>
    %c0_30 = arith.constant 0 : index
    %c0_31 = arith.constant 0 : index
    %66 = vector.load %arg9[%c0_30, %c0_31] : memref<16x128xf32, #tpu.memory_space<vmem>>, vector<16x128xf32>
    tpu.vector_store %arg9[%c0_30, %c0_31], %65 {strides = array<i32>} : memref<16x128xf32, #tpu.memory_space<vmem>>, vector<16x128xf32>,
    return
  }
  func.func @transform_0(%arg0: i32) -> (i32, i32) {
    %c0_i32 = arith.constant 0 : i32
    %c0_i32_0 = arith.constant 0 : i32
    return %arg0, %c0_i32 : i32, i32
  }
  func.func @transform_1(%arg0: i32) -> (i32, i32) {
    %c0_i32 = arith.constant 0 : i32
    %c0_i32_0 = arith.constant 0 : i32
    return %arg0, %c0_i32 : i32, i32
  }
  func.func @transform_2(%arg0: i32) -> (i32, i32) {
    %c0_i32 = arith.constant 0 : i32
    %c0_i32_0 = arith.constant 0 : i32
    %c0_i32_1 = arith.constant 0 : i32
    return %c0_i32, %c0_i32_0 : i32, i32
  }
  func.func @transform_3(%arg0: i32) -> (i32, i32) {
    %c0_i32 = arith.constant 0 : i32
    %c0_i32_0 = arith.constant 0 : i32
    %c0_i32_1 = arith.constant 0 : i32
    return %c0_i32, %c0_i32_0 : i32, i32
  }
  func.func @transform_4(%arg0: i32) -> (i32, i32) {
    %c0_i32 = arith.constant 0 : i32
    %c0_i32_0 = arith.constant 0 : i32
    %c0_i32_1 = arith.constant 0 : i32
    return %c0_i32, %c0_i32_0 : i32, i32
  }
  func.func @transform_5(%arg0: i32) -> (i32, i32) {
    %c0_i32 = arith.constant 0 : i32
    %c0_i32_0 = arith.constant 0 : i32
    %c0_i32_1 = arith.constant 0 : i32
    return %c0_i32, %c0_i32_0 : i32, i32
  }
  func.func @transform_6(%arg0: i32) -> (i32, i32) {
    %c0_i32 = arith.constant 0 : i32
    %c0_i32_0 = arith.constant 0 : i32
    %c0_i32_1 = arith.constant 0 : i32
    return %c0_i32, %c0_i32_0 : i32, i32
  }
  func.func @transform_7(%arg0: i32) -> (i32, i32) {
    %c0_i32 = arith.constant 0 : i32
    %c0_i32_0 = arith.constant 0 : i32
    %c0_i32_1 = arith.constant 0 : i32
    return %c0_i32, %c0_i32_0 : i32, i32
  }
  func.func @transform_8(%arg0: i32) -> (i32, i32) {
    %c0_i32 = arith.constant 0 : i32
    %c0_i32_0 = arith.constant 0 : i32
    return %arg0, %c0_i32 : i32, i32
  }
}

</mosaic_0001>

<llo_original>
// kernel: tpu_custom_call.1
$region0: #{tpu_custom_call.1}
  #allocation0 [shape = 'u32[]', space=smem, size = 0x4, offset = 0x4, fixed_abs, tag = 'smem constant byte address 0x4 - core index']
  #allocation1 [shape = 'u32[72,128]{1,0:T(1,128)}', space=vmem, size = 0x9000, scoped, tag = 'internal scratch']
  %s0 = inlined_call_operand.vmem [shape: f32[16,128], index: 0, kind: input, shape index: {}]
  %s1 = inlined_call_operand.vmem [shape: f32[16,1], index: 1, kind: input, shape index: {}]
  %s2 = inlined_call_operand.hbm [shape: bf16[128,256], index: 2, kind: input, shape index: {}]
  %s3 = inlined_call_operand.vmem [shape: f32[1,256], index: 3, kind: input, shape index: {}]
  %s4 = inlined_call_operand.hbm [shape: bf16[256,128], index: 4, kind: input, shape index: {}]
  %s5 = inlined_call_operand.vmem [shape: f32[1,128], index: 5, kind: input, shape index: {}]
  %s6 = inlined_call_operand.hbm [shape: bf16[128,128], index: 6, kind: input, shape index: {}]
  %s7 = inlined_call_operand.vmem [shape: f32[1,128], index: 7, kind: input, shape index: {}]
  %s8 = inlined_call_operand.hbm [shape: f32[16,128], index: 8, kind: output, shape index: {}]
  %s9 = sld [smem:[#allocation0]]
  $region54: #{tpu_custom_call.1} parent=0
    _
  %s11 = ssub.s32 1, %s9
  %s12 = scalar_select 0, %s11, %s9
  $region1: #{tpu_custom_call.1} parent=0
    #allocation2 [shape = 'u8[65536]{0}', space=vmem, size = 0x10000, scoped, tag = 'input window, operand 2, single buffered']
    #allocation3 [shape = 's32[1]{0}', space=sflag, size = 0x4, scoped, tag = 'scoped memory for tpu_custom_call.1']
    #allocation4 [shape = 's32[1]{0}', space=sflag, size = 0x4, scoped, tag = 'scoped memory for tpu_custom_call.1']
    #allocation5 [shape = 'u8[65536]{0}', space=vmem, size = 0x10000, scoped, tag = 'input window, operand 4, single buffered']
    #allocation6 [shape = 's32[1]{0}', space=sflag, size = 0x4, scoped, tag = 'scoped memory for tpu_custom_call.1']
    #allocation7 [shape = 'u8[32768]{0}', space=vmem, size = 0x8000, scoped, tag = 'input window, operand 6, single buffered']
    #allocation8 [shape = 'u8[8192]{0}', space=vmem, size = 0x2000, scoped, tag = 'output window, operand 0, single buffered']
    %13 = vsyncpa [#allocation3], 0
    %14 = vsyncpa [#allocation6], 0
    %15 = vsyncpa [#allocation4], 0
    // Predicated region
    $region2: #{tpu_custom_call.1} parent=1 // pred_check
      _
    $region3: #{tpu_custom_call.1} parent=1 // pred_check_branch
      %17 = sbr.rel (0) target = $region5
    $region4: #{tpu_custom_call.1} parent=1 // pred_region
      _
    $region5: #{tpu_custom_call.1} parent=1 // pred_fallthru
      _
    // Predicated region
    $region6: #{tpu_custom_call.1} parent=1 // pred_check
      _
    $region7: #{tpu_custom_call.1} parent=1 // pred_check_branch
      %19 = sbr.rel (0) target = $region9
    $region8: #{tpu_custom_call.1} parent=1 // pred_region
      _
    $region9: #{tpu_custom_call.1} parent=1 // pred_fallthru
      _
    // Predicated region
    $region10: #{tpu_custom_call.1} parent=1 // pred_check
      _
    $region11: #{tpu_custom_call.1} parent=1 // pred_check_branch
      %21 = sbr.rel (0) target = $region13
    $region12: #{tpu_custom_call.1} parent=1 // pred_region
      %23 = vsyncadd [#allocation3], 0
      %s24 = sshll.u32 %s2, 4
      %s25 = int_to_ptr.hbm [resolvable:$true] %s24
      %s26 = sshll.u32 [#allocation2], 4
      %s27 = int_to_ptr.vmem [resolvable:$true] %s26
      %32 = dma.hbm_to_vmem [thread:$0]  %s25, 2048, %s27, [#allocation3], 128, 128, 8
    $region13: #{tpu_custom_call.1} parent=1 // pred_fallthru
      _
    // Predicated region
    $region14: #{tpu_custom_call.1} parent=1 // pred_check
      _
    $region15: #{tpu_custom_call.1} parent=1 // pred_check_branch
      %34 = sbr.rel (0) target = $region17
    $region16: #{tpu_custom_call.1} parent=1 // pred_region
      _
    $region17: #{tpu_custom_call.1} parent=1 // pred_fallthru
      _
    // Predicated region
    $region18: #{tpu_custom_call.1} parent=1 // pred_check
      _
    $region19: #{tpu_custom_call.1} parent=1 // pred_check_branch
      %36 = sbr.rel (0) target = $region21
    $region20: #{tpu_custom_call.1} parent=1 // pred_region
      %38 = vsyncadd [#allocation6], 0
      %s39 = sshll.u32 %s4, 4
      %s40 = int_to_ptr.hbm [resolvable:$true] %s39
      %s41 = sshll.u32 [#allocation5], 4
      %s42 = int_to_ptr.vmem [resolvable:$true] %s41
      %47 = dma.hbm_to_vmem [thread:$0]  %s40, 2048, %s42, [#allocation6], 64, 64, 4
    $region21: #{tpu_custom_call.1} parent=1 // pred_fallthru
      _
    // Predicated region
    $region22: #{tpu_custom_call.1} parent=1 // pred_check
      _
    $region23: #{tpu_custom_call.1} parent=1 // pred_check_branch
      %49 = sbr.rel (0) target = $region25
    $region24: #{tpu_custom_call.1} parent=1 // pred_region
      _
    $region25: #{tpu_custom_call.1} parent=1 // pred_fallthru
      _
    // Predicated region
    $region26: #{tpu_custom_call.1} parent=1 // pred_check
      _
    $region27: #{tpu_custom_call.1} parent=1 // pred_check_branch
      %51 = sbr.rel (0) target = $region29
    $region28: #{tpu_custom_call.1} parent=1 // pred_region
      %53 = vsyncadd [#allocation6], 0
      %s54 = sshll.u32 %s6, 4
      %s55 = int_to_ptr.hbm [resolvable:$true] %s54
      %s56 = sshll.u32 [#allocation7], 4
      %s57 = int_to_ptr.vmem [resolvable:$true] %s56
      %62 = dma.hbm_to_vmem [thread:$0]  %s55, 1024, %s57, [#allocation6], 64, 64, 4
    $region29: #{tpu_custom_call.1} parent=1 // pred_fallthru
      _
    // Predicated region
    $region30: #{tpu_custom_call.1} parent=1 // pred_check
      _
    $region31: #{tpu_custom_call.1} parent=1 // pred_check_branch
      %64 = sbr.rel (0) target = $region33
    $region32: #{tpu_custom_call.1} parent=1 // pred_region
      _
    $region33: #{tpu_custom_call.1} parent=1 // pred_fallthru
      _
    // Predicated region
    $region34: #{tpu_custom_call.1} parent=1 // pred_check
      _
    $region35: #{tpu_custom_call.1} parent=1 // pred_check_branch
      %66 = sbr.rel (0) target = $region37
    $region36: #{tpu_custom_call.1} parent=1 // pred_region
      %68 = dma.done [#allocation3], 2048
    $region37: #{tpu_custom_call.1} parent=1 // pred_fallthru
      _
    // Predicated region
    $region38: #{tpu_custom_call.1} parent=1 // pred_check
      _
    $region39: #{tpu_custom_call.1} parent=1 // pred_check_branch
      %70 = sbr.rel (0) target = $region41
    $region40: #{tpu_custom_call.1} parent=1 // pred_region
      %72 = dma.done [#allocation6], 2048
    $region41: #{tpu_custom_call.1} parent=1 // pred_fallthru
      _
    // Predicated region
    $region42: #{tpu_custom_call.1} parent=1 // pred_check
      _
    $region43: #{tpu_custom_call.1} parent=1 // pred_check_branch
      %74 = sbr.rel (0) target = $region45
    $region44: #{tpu_custom_call.1} parent=1 // pred_region
      %76 = dma.done [#allocation6], 1024
    $region45: #{tpu_custom_call.1} parent=1 // pred_fallthru
      _
    %v77 = vld [vmem:[%s0] sm:$0xff]
    %v78 = vld [vmem:[%s0 + $0x8] sm:$0xff]
    %v79 = vld [vmem:[%s1] sm:$0xff]
    %v80 = vld [vmem:[%s1 + $0x8] sm:$0xff]
    %82 = vset.pattern.permute.xlu0 0
    %83 = vperm.xlu0 %82, %v79
    %v84 = vpop.permute.xlu0 %83
    %87 = vset.pattern.permute.xlu0 0
    %88 = vperm.xlu0 %87, %v80
    %v89 = vpop.permute.xlu0 %88
    %v91 = vmul.f32 %v77, %v84
    %v92 = vmul.f32 %v78, %v89
    %93 = vadd.xlane.f32.xlu0 %v91
    %v94 = vpop.xlane.xlu0 %93
    %95 = vadd.xlane.f32.xlu0 %v92
    %v96 = vpop.xlane.xlu0 %95
    %v97 = vmul.f32 %v91, %v91
    %v98 = vmul.f32 %v92, %v92
    %99 = vadd.xlane.f32.xlu0 %v97
    %v100 = vpop.xlane.xlu0 %99
    %101 = vadd.xlane.f32.xlu0 %v98
    %v102 = vpop.xlane.xlu0 %101
    %v103 = vmul.f32 %v94, 0.0078125
    %v104 = vmul.f32 %v96, 0.0078125
    %v105 = vmul.f32 %v100, 0.0078125
    %v106 = vmul.f32 %v102, 0.0078125
    %v107 = vmul.f32 %v103, %v103
    %v108 = vmul.f32 %v104, %v104
    %v109 = vsub.f32 %v105, %v107
    %v110 = vsub.f32 %v106, %v108
    %v111 = vsub.f32 %v91, %v103
    %v112 = vsub.f32 %v92, %v104
    %v113 = vadd.f32 %v109, 1e-05
    %v114 = vadd.f32 %v110, 1e-05
    %v115 = vrsqrt.pop %v113
    %v116 = vmul.f32 %v115, %v113
    %v117 = vmul.f32 %v116, %v115
    %v118 = vmul.f32 0.5, %v117
    %v119 = vsub.f32 1.5, %v118
    %v120 = vmul.f32 %v115, %v119
    %vm121 = vweird.f32 %v113
    %vm122 = vweird.f32 %v115
    %vm123 = vmor %vm121, %vm122
    %v124 = vsel %vm123, %v115, %v120
    %v125 = vrsqrt.pop %v114
    %v126 = vmul.f32 %v125, %v114
    %v127 = vmul.f32 %v126, %v125
    %v128 = vmul.f32 0.5, %v127
    %v129 = vsub.f32 1.5, %v128
    %v130 = vmul.f32 %v125, %v129
    %vm131 = vweird.f32 %v114
    %vm132 = vweird.f32 %v125
    %vm133 = vmor %vm131, %vm132
    %v134 = vsel %vm133, %v125, %v130
    %v135 = vmul.f32 %v111, %v124
    %v136 = vmul.f32 %v112, %v134
    %v137 = vpack.c.bf16 %v136, %v135
    %v138 = vld [vmem:[#allocation2] sm:$0xff]
    %v139 = vld [vmem:[#allocation2 + $0x8] sm:$0xff]
    %v140 = vld [vmem:[#allocation2 + $0x10] sm:$0xff]
    %v141 = vld [vmem:[#allocation2 + $0x18] sm:$0xff]
    %v142 = vld [vmem:[#allocation2 + $0x20] sm:$0xff]
    %v143 = vld [vmem:[#allocation2 + $0x28] sm:$0xff]
    %v144 = vld [vmem:[#allocation2 + $0x30] sm:$0xff]
    %v145 = vld [vmem:[#allocation2 + $0x38] sm:$0xff]
    %v146 = vld [vmem:[#allocation2 + $0x40] sm:$0xff]
    %v147 = vld [vmem:[#allocation2 + $0x48] sm:$0xff]
    %v148 = vld [vmem:[#allocation2 + $0x50] sm:$0xff]
    %v149 = vld [vmem:[#allocation2 + $0x58] sm:$0xff]
    %v150 = vld [vmem:[#allocation2 + $0x60] sm:$0xff]
    %v151 = vld [vmem:[#allocation2 + $0x68] sm:$0xff]
    %v152 = vld [vmem:[#allocation2 + $0x70] sm:$0xff]
    %v153 = vld [vmem:[#allocation2 + $0x78] sm:$0xff]
    %v154 = vld [vmem:[%s3] sm:$0x3]
    %v156 = vperm.slane %v154, 0
    %v157 = vperm.slane %v154, 1
    %v176 = vunpack.c.l.b16 %v138
    %v177 = vunpack.c.h.b16 %v138
    %v178 = vunpack.c.l.b16 %v139
    %v179 = vunpack.c.h.b16 %v139
    %v180 = vunpack.c.l.b16 %v140
    %v181 = vunpack.c.h.b16 %v140
    %v182 = vunpack.c.l.b16 %v141
    %v183 = vunpack.c.h.b16 %v141
    %v184 = vunpack.c.l.b16 %v142
    %v185 = vunpack.c.h.b16 %v142
    %v186 = vunpack.c.l.b16 %v143
    %v187 = vunpack.c.h.b16 %v143
    %v188 = vunpack.c.l.b16 %v144
    %v189 = vunpack.c.h.b16 %v144
    %v190 = vunpack.c.l.b16 %v145
    %v191 = vunpack.c.h.b16 %v145
    %v192 = vunpack.c.l.b16 %v146
    %v193 = vunpack.c.h.b16 %v146
    %v194 = vunpack.c.l.b16 %v147
    %v195 = vunpack.c.h.b16 %v147
    %v196 = vunpack.c.l.b16 %v148
    %v197 = vunpack.c.h.b16 %v148
    %v198 = vunpack.c.l.b16 %v149
    %v199 = vunpack.c.h.b16 %v149
    %v200 = vunpack.c.l.b16 %v150
    %v201 = vunpack.c.h.b16 %v150
    %v202 = vunpack.c.l.b16 %v151
    %v203 = vunpack.c.h.b16 %v151
    %v204 = vunpack.c.l.b16 %v152
    %v205 = vunpack.c.h.b16 %v152
    %v206 = vunpack.c.l.b16 %v153
    %v207 = vunpack.c.h.b16 %v153
    %v208 = vpack.c.b16 %v178, %v176
    %v209 = vpack.c.b16 %v179, %v177
    %v210 = vpack.c.b16 %v182, %v180
    %v211 = vpack.c.b16 %v183, %v181
    %v212 = vpack.c.b16 %v186, %v184
    %v213 = vpack.c.b16 %v187, %v185
    %v214 = vpack.c.b16 %v190, %v188
    %v215 = vpack.c.b16 %v191, %v189
    %v216 = vpack.c.b16 %v194, %v192
    %v217 = vpack.c.b16 %v195, %v193
    %v218 = vpack.c.b16 %v198, %v196
    %v219 = vpack.c.b16 %v199, %v197
    %v220 = vpack.c.b16 %v202, %v200
    %v221 = vpack.c.b16 %v203, %v201
    %v222 = vpack.c.b16 %v206, %v204
    %v223 = vpack.c.b16 %v207, %v205
    %240 = vmatpush.bf16.msra.mxu0 %v222
    %241 = vmatpush.bf16.msra.mxu0 %v220
    %242 = vmatpush.bf16.msra.mxu0 %v218
    %243 = vmatpush.bf16.msra.mxu0 %v216
    %244 = vmatpush.bf16.msra.mxu0 %v214
    %245 = vmatpush.bf16.msra.mxu0 %v212
    %246 = vmatpush.bf16.msra.mxu0 %v210
    %247 = vmatpush.bf16.msra.mxu0 %v208
    %248 = vmatmul.bf16.gmra.mxu0 %v137
    %v249 = vpop.f32.mrf.mxu0
    %v250 = vadd.f32 %v156, %v249
    %v251 = vpop.f32.mrf.mxu0
    %v252 = vadd.f32 %v156, %v251
    %253 = vdwg.mxu0
    %254 = vmatpush.bf16.msra.mxu0 %v223
    %255 = vmatpush.bf16.msra.mxu0 %v221
    %256 = vmatpush.bf16.msra.mxu0 %v219
    %257 = vmatpush.bf16.msra.mxu0 %v217
    %258 = vmatpush.bf16.msra.mxu0 %v215
    %259 = vmatpush.bf16.msra.mxu0 %v213
    %260 = vmatpush.bf16.msra.mxu0 %v211
    %261 = vmatpush.bf16.msra.mxu0 %v209
    %262 = vmatmul.bf16.gmra.mxu0 %v137
    %v263 = vpop.f32.mrf.mxu0
    %v264 = vadd.f32 %v157, %v263
    %v265 = vpop.f32.mrf.mxu0
    %v266 = vadd.f32 %v157, %v265
    %267 = vdwg.mxu0
    %v268 = vmul.f32 %v250, 0.5
    %v269 = vmul.f32 %v264, 0.5
    %v270 = vmul.f32 %v252, 0.5
    %v271 = vmul.f32 %v266, 0.5
    %v272 = vmul.f32 %v250, 0.044715
    %v273 = vmul.f32 %v264, 0.044715
    %v274 = vmul.f32 %v252, 0.044715
    %v275 = vmul.f32 %v266, 0.044715
    %v276 = vmul.f32 %v272, %v250
    %v277 = vmul.f32 %v273, %v264
    %v278 = vmul.f32 %v274, %v252
    %v279 = vmul.f32 %v275, %v266
    %v280 = vmul.f32 %v276, %v250
    %v281 = vmul.f32 %v277, %v264
    %v282 = vmul.f32 %v278, %v252
    %v283 = vmul.f32 %v279, %v266
    %v284 = vadd.f32 %v250, %v280
    %v285 = vadd.f32 %v264, %v281
    %v286 = vadd.f32 %v252, %v282
    %v287 = vadd.f32 %v266, %v283
    %v288 = vmul.f32 %v284, 0.7978846
    %v289 = vmul.f32 %v285, 0.7978846
    %v290 = vmul.f32 %v286, 0.7978846
    %v291 = vmul.f32 %v287, 0.7978846
    %v292 = vtanh.pop %v288
    %v293 = vtanh.pop %v289
    %v294 = vtanh.pop %v290
    %v295 = vtanh.pop %v291
    %v296 = vadd.f32 %v292, 1.0
    %v297 = vadd.f32 %v293, 1.0
    %v298 = vadd.f32 %v294, 1.0
    %v299 = vadd.f32 %v295, 1.0
    %v300 = vmul.f32 %v268, %v296
    %v301 = vmul.f32 %v269, %v297
    %v302 = vmul.f32 %v270, %v298
    %v303 = vmul.f32 %v271, %v299
    %v304 = vpack.c.bf16 %v302, %v300
    %v305 = vpack.c.bf16 %v303, %v301
    %v306 = vld [vmem:[#allocation5] sm:$0xf]
    %v307 = vld [vmem:[#allocation5 + $0x4] sm:$0xf]
    %v308 = vld [vmem:[#allocation5 + $0x8] sm:$0xf]
    %v309 = vld [vmem:[#allocation5 + $0xc] sm:$0xf]
    %v310 = vld [vmem:[#allocation5 + $0x10] sm:$0xf]
    %v311 = vld [vmem:[#allocation5 + $0x14] sm:$0xf]
    %v312 = vld [vmem:[#allocation5 + $0x18] sm:$0xf]
    %v313 = vld [vmem:[#allocation5 + $0x1c] sm:$0xf]
    %v314 = vld [vmem:[#allocation5 + $0x20] sm:$0xf]
    %v315 = vld [vmem:[#allocation5 + $0x24] sm:$0xf]
    %v316 = vld [vmem:[#allocation5 + $0x28] sm:$0xf]
    %v317 = vld [vmem:[#allocation5 + $0x2c] sm:$0xf]
    %v318 = vld [vmem:[#allocation5 + $0x30] sm:$0xf]
    %v319 = vld [vmem:[#allocation5 + $0x34] sm:$0xf]
    %v320 = vld [vmem:[#allocation5 + $0x38] sm:$0xf]
    %v321 = vld [vmem:[#allocation5 + $0x3c] sm:$0xf]
    %v322 = vld [vmem:[#allocation5 + $0x40] sm:$0xf]
    %v323 = vld [vmem:[#allocation5 + $0x44] sm:$0xf]
    %v324 = vld [vmem:[#allocation5 + $0x48] sm:$0xf]
    %v325 = vld [vmem:[#allocation5 + $0x4c] sm:$0xf]
    %v326 = vld [vmem:[#allocation5 + $0x50] sm:$0xf]
    %v327 = vld [vmem:[#allocation5 + $0x54] sm:$0xf]
    %v328 = vld [vmem:[#allocation5 + $0x58] sm:$0xf]
    %v329 = vld [vmem:[#allocation5 + $0x5c] sm:$0xf]
    %v330 = vld [vmem:[#allocation5 + $0x60] sm:$0xf]
    %v331 = vld [vmem:[#allocation5 + $0x64] sm:$0xf]
    %v332 = vld [vmem:[#allocation5 + $0x68] sm:$0xf]
    %v333 = vld [vmem:[#allocation5 + $0x6c] sm:$0xf]
    %v334 = vld [vmem:[#allocation5 + $0x70] sm:$0xf]
    %v335 = vld [vmem:[#allocation5 + $0x74] sm:$0xf]
    %v336 = vld [vmem:[#allocation5 + $0x78] sm:$0xf]
    %v337 = vld [vmem:[#allocation5 + $0x7c] sm:$0xf]
    %v338 = vld [vmem:[%s5] sm:$0x1]
    %v340 = vperm.slane %v338, 0
    %v374 = vunpack.c.l.b16 %v306
    %v375 = vunpack.c.l.b16 %v307
    %v376 = vunpack.c.l.b16 %v308
    %v377 = vunpack.c.l.b16 %v309
    %v378 = vunpack.c.l.b16 %v310
    %v379 = vunpack.c.l.b16 %v311
    %v380 = vunpack.c.l.b16 %v312
    %v381 = vunpack.c.l.b16 %v313
    %v382 = vunpack.c.l.b16 %v314
    %v383 = vunpack.c.l.b16 %v315
    %v384 = vunpack.c.l.b16 %v316
    %v385 = vunpack.c.l.b16 %v317
    %v386 = vunpack.c.l.b16 %v318
    %v387 = vunpack.c.l.b16 %v319
    %v388 = vunpack.c.l.b16 %v320
    %v389 = vunpack.c.l.b16 %v321
    %v390 = vunpack.c.l.b16 %v322
    %v391 = vunpack.c.l.b16 %v323
    %v392 = vunpack.c.l.b16 %v324
    %v393 = vunpack.c.l.b16 %v325
    %v394 = vunpack.c.l.b16 %v326
    %v395 = vunpack.c.l.b16 %v327
    %v396 = vunpack.c.l.b16 %v328
    %v397 = vunpack.c.l.b16 %v329
    %v398 = vunpack.c.l.b16 %v330
    %v399 = vunpack.c.l.b16 %v331
    %v400 = vunpack.c.l.b16 %v332
    %v401 = vunpack.c.l.b16 %v333
    %v402 = vunpack.c.l.b16 %v334
    %v403 = vunpack.c.l.b16 %v335
    %v404 = vunpack.c.l.b16 %v336
    %v405 = vunpack.c.l.b16 %v337
    %v406 = vpack.c.b16 %v375, %v374
    %v407 = vpack.c.b16 %v377, %v376
    %v408 = vpack.c.b16 %v379, %v378
    %v409 = vpack.c.b16 %v381, %v380
    %v410 = vpack.c.b16 %v383, %v382
    %v411 = vpack.c.b16 %v385, %v384
    %v412 = vpack.c.b16 %v387, %v386
    %v413 = vpack.c.b16 %v389, %v388
    %v414 = vpack.c.b16 %v391, %v390
    %v415 = vpack.c.b16 %v393, %v392
    %v416 = vpack.c.b16 %v395, %v394
    %v417 = vpack.c.b16 %v397, %v396
    %v418 = vpack.c.b16 %v399, %v398
    %v419 = vpack.c.b16 %v401, %v400
    %v420 = vpack.c.b16 %v403, %v402
    %v421 = vpack.c.b16 %v405, %v404
    %438 = vmatpush.bf16.msra.mxu0 %v413
    %439 = vmatpush.bf16.msra.mxu0 %v412
    %440 = vmatpush.bf16.msra.mxu0 %v411
    %441 = vmatpush.bf16.msra.mxu0 %v410
    %442 = vmatpush.bf16.msra.mxu0 %v409
    %443 = vmatpush.bf16.msra.mxu0 %v408
    %444 = vmatpush.bf16.msra.mxu0 %v407
    %445 = vmatpush.bf16.msra.mxu0 %v406
    %446 = vmatmul.bf16.gmra.mxu0 %v304
    %v447 = vpop.f32.mrf.mxu0
    %v448 = vadd.f32 %v340, %v447
    %v449 = vpop.f32.mrf.mxu0
    %v450 = vadd.f32 %v340, %v449
    %451 = vdwg.mxu0
    %452 = vmatpush.bf16.msra.mxu0 %v421
    %453 = vmatpush.bf16.msra.mxu0 %v420
    %454 = vmatpush.bf16.msra.mxu0 %v419
    %455 = vmatpush.bf16.msra.mxu0 %v418
    %456 = vmatpush.bf16.msra.mxu0 %v417
    %457 = vmatpush.bf16.msra.mxu0 %v416
    %458 = vmatpush.bf16.msra.mxu0 %v415
    %459 = vmatpush.bf16.msra.mxu0 %v414
    %460 = vmatmul.bf16.gmra.mxu0 %v305
    %v461 = vpop.f32.mrf.mxu0
    %v462 = vadd.f32 %v448, %v461
    %v463 = vpop.f32.mrf.mxu0
    %v464 = vadd.f32 %v450, %v463
    %465 = vdwg.mxu0
    %v466 = vmul.f32 %v462, 0.5
    %v467 = vmul.f32 %v464, 0.5
    %v468 = vmul.f32 %v462, 0.044715
    %v469 = vmul.f32 %v464, 0.044715
    %v470 = vmul.f32 %v468, %v462
    %v471 = vmul.f32 %v469, %v464
    %v472 = vmul.f32 %v470, %v462
    %v473 = vmul.f32 %v471, %v464
    %v474 = vadd.f32 %v462, %v472
    %v475 = vadd.f32 %v464, %v473
    %v476 = vmul.f32 %v474, 0.7978846
    %v477 = vmul.f32 %v475, 0.7978846
    %v478 = vtanh.pop %v476
    %v479 = vtanh.pop %v477
    %v480 = vadd.f32 %v478, 1.0
    %v481 = vadd.f32 %v479, 1.0
    %v482 = vmul.f32 %v466, %v480
    %v483 = vmul.f32 %v467, %v481
    %v484 = vpack.c.bf16 %v483, %v482
    %v485 = vld [vmem:[#allocation7] sm:$0xf]
    %v486 = vld [vmem:[#allocation7 + $0x4] sm:$0xf]
    %v487 = vld [vmem:[#allocation7 + $0x8] sm:$0xf]
    %v488 = vld [vmem:[#allocation7 + $0xc] sm:$0xf]
    %v489 = vld [vmem:[#allocation7 + $0x10] sm:$0xf]
    %v490 = vld [vmem:[#allocation7 + $0x14] sm:$0xf]
    %v491 = vld [vmem:[#allocation7 + $0x18] sm:$0xf]
    %v492 = vld [vmem:[#allocation7 + $0x1c] sm:$0xf]
    %v493 = vld [vmem:[#allocation7 + $0x20] sm:$0xf]
    %v494 = vld [vmem:[#allocation7 + $0x24] sm:$0xf]
    %v495 = vld [vmem:[#allocation7 + $0x28] sm:$0xf]
    %v496 = vld [vmem:[#allocation7 + $0x2c] sm:$0xf]
    %v497 = vld [vmem:[#allocation7 + $0x30] sm:$0xf]
    %v498 = vld [vmem:[#allocation7 + $0x34] sm:$0xf]
    %v499 = vld [vmem:[#allocation7 + $0x38] sm:$0xf]
    %v500 = vld [vmem:[#allocation7 + $0x3c] sm:$0xf]
    %v501 = vld [vmem:[%s7] sm:$0x1]
    %v503 = vperm.slane %v501, 0
    %v521 = vunpack.c.l.b16 %v485
    %v522 = vunpack.c.l.b16 %v486
    %v523 = vunpack.c.l.b16 %v487
    %v524 = vunpack.c.l.b16 %v488
    %v525 = vunpack.c.l.b16 %v489
    %v526 = vunpack.c.l.b16 %v490
    %v527 = vunpack.c.l.b16 %v491
    %v528 = vunpack.c.l.b16 %v492
    %v529 = vunpack.c.l.b16 %v493
    %v530 = vunpack.c.l.b16 %v494
    %v531 = vunpack.c.l.b16 %v495
    %v532 = vunpack.c.l.b16 %v496
    %v533 = vunpack.c.l.b16 %v497
    %v534 = vunpack.c.l.b16 %v498
    %v535 = vunpack.c.l.b16 %v499
    %v536 = vunpack.c.l.b16 %v500
    %v537 = vpack.c.b16 %v522, %v521
    %v538 = vpack.c.b16 %v524, %v523
    %v539 = vpack.c.b16 %v526, %v525
    %v540 = vpack.c.b16 %v528, %v527
    %v541 = vpack.c.b16 %v530, %v529
    %v542 = vpack.c.b16 %v532, %v531
    %v543 = vpack.c.b16 %v534, %v533
    %v544 = vpack.c.b16 %v536, %v535
    %553 = vmatpush.bf16.msra.mxu0 %v544
    %554 = vmatpush.bf16.msra.mxu0 %v543
    %555 = vmatpush.bf16.msra.mxu0 %v542
    %556 = vmatpush.bf16.msra.mxu0 %v541
    %557 = vmatpush.bf16.msra.mxu0 %v540
    %558 = vmatpush.bf16.msra.mxu0 %v539
    %559 = vmatpush.bf16.msra.mxu0 %v538
    %560 = vmatpush.bf16.msra.mxu0 %v537
    %561 = vmatmul.bf16.gmra.mxu0 %v484
    %v562 = vpop.f32.mrf.mxu0
    %v563 = vadd.f32 %v503, %v562
    %v564 = vpop.f32.mrf.mxu0
    %v565 = vadd.f32 %v503, %v564
    %566 = vdwg.mxu0
    %567 = vst [vmem:[#allocation8] sm:$0xff] %v563
    %568 = vst [vmem:[#allocation8 + $0x8] sm:$0xff] %v565
    // Predicated region
    $region46: #{tpu_custom_call.1} parent=1 // pred_check
      _
    $region47: #{tpu_custom_call.1} parent=1 // pred_check_branch
      %570 = sbr.rel (0) target = $region49
    $region48: #{tpu_custom_call.1} parent=1 // pred_region
      %572 = vsyncadd [#allocation4], 0
      %s573 = sshll.u32 [#allocation8], 4
      %s574 = int_to_ptr.vmem [resolvable:$true] %s573
      %s575 = sshll.u32 %s8, 4
      %s576 = int_to_ptr.hbm [resolvable:$true] %s575
      %581 = dma.vmem_to_hbm [thread:$0]  %s574, 256, %s576, [#allocation4], 128, 128, 8
    $region49: #{tpu_custom_call.1} parent=1 // pred_fallthru
      _
    // Predicated region
    $region50: #{tpu_custom_call.1} parent=1 // pred_check
      _
    $region51: #{tpu_custom_call.1} parent=1 // pred_check_branch
      %583 = sbr.rel (0) target = $region53
    $region52: #{tpu_custom_call.1} parent=1 // pred_region
      %585 = dma.done [#allocation4], 256
    $region53: #{tpu_custom_call.1} parent=1 // pred_fallthru
      _
    %586 = vsyncpa [#allocation3], 1
    %587 = vsyncpa [#allocation6], 1
    %588 = vsyncpa [#allocation4], 1

</llo_original>
